<compile_context>
chip_gen: v5e
topology: v5e:2x2
jax: 0.10.0
libtpu: 0.0.40
codegen_flags: <defaults>
</compile_context>

<pallas_src>
import functools

import jax
import jax.numpy as jnp
from jax.experimental import pallas as pl
from jax.experimental.pallas import tpu as pltpu


def _round_up(v, m):
    return (v + m - 1) // m * m


def _rgcn_layer_kernel(a_ref, x_ref, w_ref, b_ref, o_ref, *, R, apply_relu, n_valid, tm):
    """One RGCN hetero layer:  out[tile] = sum_r A_r[tile, :] @ (X @ W_r) + b_sum  (+ReLU).

    a_ref: (R, TM, Np)   bf16  normalized adjacency rows for this dst tile [r, dst, src]
    x_ref: (Np, Fin_p)   bf16  source-node features (full, grid-resident)
    w_ref: (R, Fin_p, Fout_p) bf16  per-relation weights
    b_ref: (1, Fout_p)   f32   hoisted bias sum_r b_r
    o_ref: (TM, Fout_p)        output tile (bf16 for the hidden layer, f32 for the last)
    """
    x = x_ref[...]
    acc = jnp.zeros((o_ref.shape[0], o_ref.shape[1]), jnp.float32)
    # Statically unrolled relation loop; per-relation accumulation (no concatenate staging,
    # no extra (R*N, F) copy).  All dot operands are bf16, accumulation is f32 on the MXU.
    for r in range(R):
        xw = jnp.dot(x, w_ref[r], preferred_element_type=jnp.float32)      # (Np, Fout_p) f32
        acc = acc + jnp.dot(a_ref[r], xw.astype(jnp.bfloat16),
                            preferred_element_type=jnp.float32)            # (TM, Fout_p) f32

    out = acc + b_ref[...]          # f32 bias add
    if apply_relu:
        out = jnp.maximum(out, 0.0)  # f32 ReLU (v5e-safe: no bf16 VALU path)

    # Zero padded dst rows so the next layer sees exactly-zero features there (otherwise
    # padded rows would hold ReLU(b_sum); correctness would then rely on A's zero-padded
    # source columns -- make it robust instead).
    row = jax.lax.broadcasted_iota(jnp.int32, out.shape, 0) + pl.program_id(0) * tm
    out = jnp.where(row < n_valid, out, 0.0)

    o_ref[...] = out.astype(o_ref.dtype)


def _rgcn_layer(a_bf16, x_bf16, w_bf16, b_sum_f32, *, apply_relu, out_dtype, n_valid, tm):
    """pallas_call wrapper for one layer, tiled over destination rows."""
    R, Np, _ = a_bf16.shape
    Fin_p = x_bf16.shape[1]
    Fout_p = w_bf16.shape[2]
    num_tiles = Np // tm

    flops = (num_tiles * 2 * R * Np * Fin_p * Fout_p    # X @ W_r (recomputed per dst tile)
             + 2 * R * Np * Np * Fout_p)                # aggregation A_r @ XW_r
    bytes_accessed = (2 * R * Np * Np                   # A (each tile read once)
                      + 2 * Np * Fin_p * num_tiles      # X (resident, counted per step)
                      + 2 * R * Fin_p * Fout_p * num_tiles
                      + 4 * Fout_p
                      + Np * Fout_p * jnp.dtype(out_dtype).itemsize)

    return pl.pallas_call(
        functools.partial(_rgcn_layer_kernel, R=R, apply_relu=apply_relu,
                          n_valid=n_valid, tm=tm),
        out_shape=jax.ShapeDtypeStruct((Np, Fout_p), out_dtype),
        grid=(num_tiles,),
        in_specs=[
            pl.BlockSpec((R, tm, Np), lambda i: (0, i, 0)),          # A rows for this tile
            pl.BlockSpec((Np, Fin_p), lambda i: (0, 0)),             # X (grid-resident)
            pl.BlockSpec((R, Fin_p, Fout_p), lambda i: (0, 0, 0)),   # W (grid-resident)
            pl.BlockSpec((1, Fout_p), lambda i: (0, 0)),             # b_sum
        ],
        out_specs=pl.BlockSpec((tm, Fout_p), lambda i: (i, 0)),
        compiler_params=pltpu.CompilerParams(
            dimension_semantics=("parallel",),        # shard dst tiles across TCs (v7x)
            vmem_limit_bytes=32 * 1024 * 1024,        # explicit, safe on v7x's 64 MiB VMEM
        ),
        cost_estimate=pl.CostEstimate(
            flops=flops, transcendentals=0, bytes_accessed=bytes_accessed),
    )(a_bf16, x_bf16, w_bf16, b_sum_f32)


def rgcn_forward(a_norm, x, params, *, tm_target=512):
    """Full RGCN forward (single node type, R relations): conv1 -> ReLU -> conv2.

    a_norm: (R, N, N) normalized adjacency [r, dst, src]; x: (N, Fin);
    params: w1 (R,Fin,Hid), b1 (R,1,Hid), w2 (R,Hid,Fout), b2 (R,1,Fout).
    Returns (N, Fout) float32.
    """
    R, N, _ = a_norm.shape
    Fin = x.shape[1]
    Hid = params["w1"].shape[2]
    Fout = params["w2"].shape[2]

    # 128-aligned N (lane-dense A tiles, clean MXU K dim) and 128-aligned feature dims.
    Np = _round_up(N, 128)
    tm = min(tm_target, Np)
    Np = _round_up(Np, tm)                      # grid divides evenly
    Fp = _round_up(Fin, 128)
    Hp = _round_up(Hid, 128)
    Op = _round_up(Fout, 128)

    # A stays (R, Np, Np) -- no A_cat transpose/reshape materialization; padded rows/cols
    # are zero, so padded sources contribute nothing to any aggregation.
    a_p = jnp.pad(a_norm.astype(jnp.float32),
                  ((0, 0), (0, Np - N), (0, Np - N))).astype(jnp.bfloat16)
    x_p = jnp.pad(x.astype(jnp.float32),
                  ((0, Np - N), (0, Fp - Fin))).astype(jnp.bfloat16)
    w1_p = jnp.pad(params["w1"].astype(jnp.float32),
                   ((0, 0), (0, Fp - Fin), (0, Hp - Hid))).astype(jnp.bfloat16)
    w2_p = jnp.pad(params["w2"].astype(jnp.float32),
                   ((0, 0), (0, Hp - Hid), (0, Op - Fout))).astype(jnp.bfloat16)
    # Bias hoist (single node type only): HeteroGraphConv('sum') adds every relation's bias.
    b1_sum = jnp.pad(params["b1"].astype(jnp.float32).sum(axis=0), ((0, 0), (0, Hp - Hid)))
    b2_sum = jnp.pad(params["b2"].astype(jnp.float32).sum(axis=0), ((0, 0), (0, Op - Fout)))

    # Layer 1 (fused ReLU), hidden stays bf16 for the layer-2 MXU operand.
    h = _rgcn_layer(a_p, x_p, w1_p, b1_sum,
                    apply_relu=True, out_dtype=jnp.bfloat16, n_valid=N, tm=tm)
    # Layer 2, f32 output.
    out = _rgcn_layer(a_p, h, w2_p, b2_sum,
                      apply_relu=False, out_dtype=jnp.float32, n_valid=N, tm=tm)
    return out[:N, :Fout]


def normalize_adj(adj):
    """GraphConv(norm='both') normalization, dense form.
    adj: (R, N_dst, N_src) -> D_in^{-1/2} A D_out^{-1/2} per relation.
    Zero-degree nodes get norm 0 here vs. DGL's clamp-to-1; identical results because
    those rows/cols of A are all-zero anyway."""
    deg_in = adj.sum(axis=2)   # (R, N_dst)
    deg_out = adj.sum(axis=1)  # (R, N_src)
    inv_sqrt_in = jnp.where(deg_in > 0, 1.0 / jnp.sqrt(jnp.maximum(deg_in, 1e-12)), 0.0)
    inv_sqrt_out = jnp.where(deg_out > 0, 1.0 / jnp.sqrt(jnp.maximum(deg_out, 1e-12)), 0.0)
    return adj * inv_sqrt_in[:, :, None] * inv_sqrt_out[:, None, :]


def rgcn_reference(a_norm, x, params):
    """Pure-JAX f32 reference for correctness checking."""
    h = jnp.zeros((x.shape[0], params["w1"].shape[2]), jnp.float32)
    for r in range(a_norm.shape[0]):
        h = h + a_norm[r] @ (x @ params["w1"][r]) + params["b1"][r]
    h = jnp.maximum(h, 0.0)
    out = jnp.zeros((x.shape[0], params["w2"].shape[2]), jnp.float32)
    for r in range(a_norm.shape[0]):
        out = out + a_norm[r] @ (h @ params["w2"][r]) + params["b2"][r]
    return out


if __name__ == "__main__":
    # Small synthetic heterograph: one node type, 3 relation types, dense adjacency.
    N = 32
    in_feats, hid_feats, out_feats = 16, 32, 8
    rel_names = ("rel0", "rel1", "rel2")
    R = len(rel_names)

    key = jax.random.PRNGKey(0)
    k_adj, k_x, k_w1, k_b1, k_w2, k_b2 = jax.random.split(key, 6)

    # adjacency[r, dst, src] in {0,1}, ~25% density (deterministic)
    adj = (jax.random.uniform(k_adj, (R, N, N)) < 0.25).astype(jnp.float32)
    x = jax.random.normal(k_x, (N, in_feats), dtype=jnp.float32)

    params = {
        "w1": 0.1 * jax.random.normal(k_w1, (R, in_feats, hid_feats), dtype=jnp.float32),
        "b1": 0.1 * jax.random.normal(k_b1, (R, 1, hid_feats), dtype=jnp.float32),
        "w2": 0.1 * jax.random.normal(k_w2, (R, hid_feats, out_feats), dtype=jnp.float32),
        "b2": 0.1 * jax.random.normal(k_b2, (R, 1, out_feats), dtype=jnp.float32),
    }

    a_norm = normalize_adj(adj)

    out = rgcn_forward(a_norm, x, params)
    out = jax.block_until_ready(out)

    ref = rgcn_reference(a_norm, x, params)
    assert out.shape == (N, out_feats)
    # bf16 MXU operands (f32 accumulation) -> relaxed tolerance vs the pure-f32 reference.
    assert jnp.allclose(out, ref, atol=2e-2, rtol=2e-2), "Pallas RGCN mismatch vs JAX reference"

    print("KERNEL_OK")
</pallas_src>

<mosaic_0001>
module attributes {stable_mosaic.version = 11 : i64} {
  func.func @_rgcn_layer_kernel(%arg0: i32, %arg1: memref<3x128x128xbf16, #tpu.memory_space<vmem>>, %arg2: memref<128x128xbf16, #tpu.memory_space<vmem>>, %arg3: memref<3x128x128xbf16, #tpu.memory_space<vmem>>, %arg4: memref<1x128xf32, #tpu.memory_space<vmem>>, %arg5: memref<128x128xbf16, #tpu.memory_space<vmem>>) attributes {dimension_semantics = [#tpu.dimension_semantics<parallel>], iteration_bounds = array<i64: 1>, scalar_prefetch = 0 : i64, scratch_operands = 0 : i64, tpu.core_type = #tpu.core_type<tc>, window_params = [{transform_indices = @transform_0, window_bounds = array<i64: 3, 128, 128>}, {pipeline_mode = #tpu.pipeline_mode<synchronous>, transform_indices = @transform_1, window_bounds = array<i64: 128, 128>}, {pipeline_mode = #tpu.pipeline_mode<synchronous>, transform_indices = @transform_2, window_bounds = array<i64: 3, 128, 128>}, {pipeline_mode = #tpu.pipeline_mode<synchronous>, transform_indices = @transform_3, window_bounds = array<i64: 1, 128>}, {transform_indices = @transform_4, window_bounds = array<i64: 128, 128>}]} {
    %c0 = arith.constant 0 : index
    %c0_0 = arith.constant 0 : index
    %0 = vector.load %arg2[%c0, %c0_0] : memref<128x128xbf16, #tpu.memory_space<vmem>>, vector<128x128xbf16>
    %cst = arith.constant 0.000000e+00 : f32
    %1 = vector.broadcast %cst : f32 to vector<128x128xf32>
    %c0_1 = arith.constant 0 : index
    %c0_2 = arith.constant 0 : index
    %c0_3 = arith.constant 0 : index
    %2 = vector.load %arg3[%c0_1, %c0_2, %c0_3] : memref<3x128x128xbf16, #tpu.memory_space<vmem>>, vector<1x128x128xbf16>
    %3 = vector.shape_cast %2 : vector<1x128x128xbf16> to vector<128x128xbf16>
    %cst_4 = arith.constant dense<0.000000e+00> : vector<128x128xf32>
    %4 = tpu.matmul %0, %3, %cst_4 {dimension_numbers = #tpu.dot_dimension_numbers<[1], [0], [0], [1], [0, 0, 1, 1], [], []>} : vector<128x128xbf16>, vector<128x128xbf16>, vector<128x128xf32> -> vector<128x128xf32>
    %c0_5 = arith.constant 0 : index
    %c0_6 = arith.constant 0 : index
    %c0_7 = arith.constant 0 : index
    %5 = vector.load %arg1[%c0_5, %c0_6, %c0_7] : memref<3x128x128xbf16, #tpu.memory_space<vmem>>, vector<1x128x128xbf16>
    %6 = vector.shape_cast %5 : vector<1x128x128xbf16> to vector<128x128xbf16>
    %7 = arith.truncf %4 : vector<128x128xf32> to vector<128x128xbf16>
    %cst_8 = arith.constant dense<0.000000e+00> : vector<128x128xf32>
    %8 = tpu.matmul %6, %7, %cst_8 {dimension_numbers = #tpu.dot_dimension_numbers<[1], [0], [0], [1], [0, 0, 1, 1], [], []>} : vector<128x128xbf16>, vector<128x128xbf16>, vector<128x128xf32> -> vector<128x128xf32>
    %9 = arith.addf %1, %8 : vector<128x128xf32>
    %c1 = arith.constant 1 : index
    %c0_9 = arith.constant 0 : index
    %c0_10 = arith.constant 0 : index
    %10 = vector.load %arg3[%c1, %c0_9, %c0_10] : memref<3x128x128xbf16, #tpu.memory_space<vmem>>, vector<1x128x128xbf16>
    %11 = vector.shape_cast %10 : vector<1x128x128xbf16> to vector<128x128xbf16>
    %cst_11 = arith.constant dense<0.000000e+00> : vector<128x128xf32>
    %12 = tpu.matmul %0, %11, %cst_11 {dimension_numbers = #tpu.dot_dimension_numbers<[1], [0], [0], [1], [0, 0, 1, 1], [], []>} : vector<128x128xbf16>, vector<128x128xbf16>, vector<128x128xf32> -> vector<128x128xf32>
    %c1_12 = arith.constant 1 : index
    %c0_13 = arith.constant 0 : index
    %c0_14 = arith.constant 0 : index
    %13 = vector.load %arg1[%c1_12, %c0_13, %c0_14] : memref<3x128x128xbf16, #tpu.memory_space<vmem>>, vector<1x128x128xbf16>
    %14 = vector.shape_cast %13 : vector<1x128x128xbf16> to vector<128x128xbf16>
    %15 = arith.truncf %12 : vector<128x128xf32> to vector<128x128xbf16>
    %cst_15 = arith.constant dense<0.000000e+00> : vector<128x128xf32>
    %16 = tpu.matmul %14, %15, %cst_15 {dimension_numbers = #tpu.dot_dimension_numbers<[1], [0], [0], [1], [0, 0, 1, 1], [], []>} : vector<128x128xbf16>, vector<128x128xbf16>, vector<128x128xf32> -> vector<128x128xf32>
    %17 = arith.addf %9, %16 : vector<128x128xf32>
    %c2 = arith.constant 2 : index
    %c0_16 = arith.constant 0 : index
    %c0_17 = arith.constant 0 : index
    %18 = vector.load %arg3[%c2, %c0_16, %c0_17] : memref<3x128x128xbf16, #tpu.memory_space<vmem>>, vector<1x128x128xbf16>
    %19 = vector.shape_cast %18 : vector<1x128x128xbf16> to vector<128x128xbf16>
    %cst_18 = arith.constant dense<0.000000e+00> : vector<128x128xf32>
    %20 = tpu.matmul %0, %19, %cst_18 {dimension_numbers = #tpu.dot_dimension_numbers<[1], [0], [0], [1], [0, 0, 1, 1], [], []>} : vector<128x128xbf16>, vector<128x128xbf16>, vector<128x128xf32> -> vector<128x128xf32>
    %c2_19 = arith.constant 2 : index
    %c0_20 = arith.constant 0 : index
    %c0_21 = arith.constant 0 : index
    %21 = vector.load %arg1[%c2_19, %c0_20, %c0_21] : memref<3x128x128xbf16, #tpu.memory_space<vmem>>, vector<1x128x128xbf16>
    %22 = vector.shape_cast %21 : vector<1x128x128xbf16> to vector<128x128xbf16>
    %23 = arith.truncf %20 : vector<128x128xf32> to vector<128x128xbf16>
    %cst_22 = arith.constant dense<0.000000e+00> : vector<128x128xf32>
    %24 = tpu.matmul %22, %23, %cst_22 {dimension_numbers = #tpu.dot_dimension_numbers<[1], [0], [0], [1], [0, 0, 1, 1], [], []>} : vector<128x128xbf16>, vector<128x128xbf16>, vector<128x128xf32> -> vector<128x128xf32>
    %25 = arith.addf %17, %24 : vector<128x128xf32>
    %c0_23 = arith.constant 0 : index
    %c0_24 = arith.constant 0 : index
    %26 = vector.load %arg4[%c0_23, %c0_24] : memref<1x128xf32, #tpu.memory_space<vmem>>, vector<1x128xf32>
    %27 = vector.broadcast %26 : vector<1x128xf32> to vector<128x128xf32>
    %28 = arith.addf %25, %27 : vector<128x128xf32>
    %cst_25 = arith.constant 0.000000e+00 : f32
    %29 = vector.broadcast %cst_25 : f32 to vector<128x128xf32>
    %30 = arith.maximumf %28, %29 : vector<128x128xf32>
    %31 = tpu.iota {dimensions = array<i32: 0>} : vector<128x128xi32>
    %c128_i32 = arith.constant 128 : i32
    %32 = arith.muli %arg0, %c128_i32 : i32
    %33 = vector.broadcast %32 : i32 to vector<128x128xi32>
    %34 = arith.addi %31, %33 : vector<128x128xi32>
    %c32_i32 = arith.constant 32 : i32
    %35 = vector.broadcast %c32_i32 : i32 to vector<128x128xi32>
    %36 = arith.cmpi slt, %34, %35 : vector<128x128xi32>
    %cst_26 = arith.constant 0.000000e+00 : f32
    %37 = vector.broadcast %cst_26 : f32 to vector<128x128xf32>
    %38 = arith.select %36, %30, %37 : vector<128x128xi1>, vector<128x128xf32>
    %39 = arith.truncf %38 : vector<128x128xf32> to vector<128x128xbf16>
    %c0_27 = arith.constant 0 : index
    %c0_28 = arith.constant 0 : index
    %40 = vector.load %arg5[%c0_27, %c0_28] : memref<128x128xbf16, #tpu.memory_space<vmem>>, vector<128x128xbf16>
    tpu.vector_store %arg5[%c0_27, %c0_28], %39 {strides = array<i32>} : memref<128x128xbf16, #tpu.memory_space<vmem>>, vector<128x128xbf16>,
    return
  }
  func.func @transform_0(%arg0: i32) -> (i32, i32, i32) {
    %c0_i32 = arith.constant 0 : i32
    %c0_i32_0 = arith.constant 0 : i32
    %c0_i32_1 = arith.constant 0 : i32
    return %c0_i32, %arg0, %c0_i32_0 : i32, i32, i32
  }
  func.func @transform_1(%arg0: i32) -> (i32, i32) {
    %c0_i32 = arith.constant 0 : i32
    %c0_i32_0 = arith.constant 0 : i32
    %c0_i32_1 = arith.constant 0 : i32
    return %c0_i32, %c0_i32_0 : i32, i32
  }
  func.func @transform_2(%arg0: i32) -> (i32, i32, i32) {
    %c0_i32 = arith.constant 0 : i32
    %c0_i32_0 = arith.constant 0 : i32
    %c0_i32_1 = arith.constant 0 : i32
    %c0_i32_2 = arith.constant 0 : i32
    return %c0_i32, %c0_i32_0, %c0_i32_1 : i32, i32, i32
  }
  func.func @transform_3(%arg0: i32) -> (i32, i32) {
    %c0_i32 = arith.constant 0 : i32
    %c0_i32_0 = arith.constant 0 : i32
    %c0_i32_1 = arith.constant 0 : i32
    return %c0_i32, %c0_i32_0 : i32, i32
  }
  func.func @transform_4(%arg0: i32) -> (i32, i32) {
    %c0_i32 = arith.constant 0 : i32
    %c0_i32_0 = arith.constant 0 : i32
    return %arg0, %c0_i32 : i32, i32
  }
}

</mosaic_0001>

<llo_original>
// kernel: tpu_custom_call.1
$region0: #{tpu_custom_call.1}
  #allocation0 [shape = 'u32[]', space=smem, size = 0x4, offset = 0x4, fixed_abs, tag = 'smem constant byte address 0x4 - core index']
  #allocation1 [shape = 'u32[72,128]{1,0:T(1,128)}', space=vmem, size = 0x9000, scoped, tag = 'internal scratch']
  %s0 = inlined_call_operand.hbm [shape: bf16[3,128,128], index: 0, kind: input, shape index: {}]
  %s1 = inlined_call_operand.hbm [shape: bf16[128,128], index: 1, kind: input, shape index: {}]
  %s2 = inlined_call_operand.hbm [shape: bf16[3,128,128], index: 2, kind: input, shape index: {}]
  %s3 = inlined_call_operand.vmem [shape: f32[1,128], index: 3, kind: input, shape index: {}]
  %s4 = inlined_call_operand.hbm [shape: bf16[128,128], index: 4, kind: output, shape index: {}]
  %s5 = sld [smem:[#allocation0]]
  $region38: #{tpu_custom_call.1} parent=0
    _
  %s7 = ssub.s32 1, %s5
  %s8 = scalar_select 0, %s7, %s5
  $region1: #{tpu_custom_call.1} parent=0
    #allocation2 [shape = 'u8[98304]{0}', space=vmem, size = 0x18000, scoped, tag = 'input window, operand 0, single buffered']
    #allocation3 [shape = 's32[1]{0}', space=sflag, size = 0x4, scoped, tag = 'scoped memory for tpu_custom_call.1']
    #allocation4 [shape = 's32[1]{0}', space=sflag, size = 0x4, scoped, tag = 'scoped memory for tpu_custom_call.1']
    #allocation5 [shape = 'u8[32768]{0}', space=vmem, size = 0x8000, scoped, tag = 'input window, operand 1, single buffered']
    #allocation6 [shape = 's32[1]{0}', space=sflag, size = 0x4, scoped, tag = 'scoped memory for tpu_custom_call.1']
    #allocation7 [shape = 'u8[98304]{0}', space=vmem, size = 0x18000, scoped, tag = 'input window, operand 2, single buffered']
    #allocation8 [shape = 'u8[32768]{0}', space=vmem, size = 0x8000, scoped, tag = 'output window, operand 0, single buffered']
    %9 = vsyncpa [#allocation3], 0
    %10 = vsyncpa [#allocation6], 0
    %11 = vsyncpa [#allocation4], 0
    // Predicated region
    $region2: #{tpu_custom_call.1} parent=1 // pred_check
      _
    $region3: #{tpu_custom_call.1} parent=1 // pred_check_branch
      %13 = sbr.rel (0) target = $region5
    $region4: #{tpu_custom_call.1} parent=1 // pred_region
      %15 = vsyncadd [#allocation3], 0
      %s16 = sshll.u32 %s0, 4
      %s17 = int_to_ptr.hbm [resolvable:$true] %s16
      %s18 = sshll.u32 [#allocation2], 4
      %s19 = int_to_ptr.vmem [resolvable:$true] %s18
      %24 = dma.hbm_to_vmem [thread:$0]  %s17, 3072, %s19, [#allocation3], 64, 64, 4
    $region5: #{tpu_custom_call.1} parent=1 // pred_fallthru
      _
    // Predicated region
    $region6: #{tpu_custom_call.1} parent=1 // pred_check
      _
    $region7: #{tpu_custom_call.1} parent=1 // pred_check_branch
      %26 = sbr.rel (0) target = $region9
    $region8: #{tpu_custom_call.1} parent=1 // pred_region
      %28 = vsyncadd [#allocation6], 0
      %s29 = sshll.u32 %s1, 4
      %s30 = int_to_ptr.hbm [resolvable:$true] %s29
      %s31 = sshll.u32 [#allocation5], 4
      %s32 = int_to_ptr.vmem [resolvable:$true] %s31
      %37 = dma.hbm_to_vmem [thread:$0]  %s30, 1024, %s32, [#allocation6], 64, 64, 4
    $region9: #{tpu_custom_call.1} parent=1 // pred_fallthru
      _
    // Predicated region
    $region10: #{tpu_custom_call.1} parent=1 // pred_check
      _
    $region11: #{tpu_custom_call.1} parent=1 // pred_check_branch
      %39 = sbr.rel (0) target = $region13
    $region12: #{tpu_custom_call.1} parent=1 // pred_region
      %41 = vsyncadd [#allocation6], 0
      %s42 = sshll.u32 %s2, 4
      %s43 = int_to_ptr.hbm [resolvable:$true] %s42
      %s44 = sshll.u32 [#allocation7], 4
      %s45 = int_to_ptr.vmem [resolvable:$true] %s44
      %50 = dma.hbm_to_vmem [thread:$0]  %s43, 3072, %s45, [#allocation6], 64, 64, 4
    $region13: #{tpu_custom_call.1} parent=1 // pred_fallthru
      _
    // Predicated region
    $region14: #{tpu_custom_call.1} parent=1 // pred_check
      _
    $region15: #{tpu_custom_call.1} parent=1 // pred_check_branch
      %52 = sbr.rel (0) target = $region17
    $region16: #{tpu_custom_call.1} parent=1 // pred_region
      _
    $region17: #{tpu_custom_call.1} parent=1 // pred_fallthru
      _
    // Predicated region
    $region18: #{tpu_custom_call.1} parent=1 // pred_check
      _
    $region19: #{tpu_custom_call.1} parent=1 // pred_check_branch
      %54 = sbr.rel (0) target = $region21
    $region20: #{tpu_custom_call.1} parent=1 // pred_region
      %56 = dma.done [#allocation3], 3072
    $region21: #{tpu_custom_call.1} parent=1 // pred_fallthru
      _
    // Predicated region
    $region22: #{tpu_custom_call.1} parent=1 // pred_check
      _
    $region23: #{tpu_custom_call.1} parent=1 // pred_check_branch
      %58 = sbr.rel (0) target = $region25
    $region24: #{tpu_custom_call.1} parent=1 // pred_region
      %60 = dma.done [#allocation6], 1024
    $region25: #{tpu_custom_call.1} parent=1 // pred_fallthru
      _
    // Predicated region
    $region26: #{tpu_custom_call.1} parent=1 // pred_check
      _
    $region27: #{tpu_custom_call.1} parent=1 // pred_check_branch
      %62 = sbr.rel (0) target = $region29
    $region28: #{tpu_custom_call.1} parent=1 // pred_region
      %64 = dma.done [#allocation6], 3072
    $region29: #{tpu_custom_call.1} parent=1 // pred_fallthru
      _
    %v65 = vld [vmem:[#allocation5] sm:$0xf]
    %v66 = vld [vmem:[#allocation5 + $0x4] sm:$0xf]
    %v67 = vld [vmem:[#allocation5 + $0x8] sm:$0xf]
    %v68 = vld [vmem:[#allocation5 + $0xc] sm:$0xf]
    %v69 = vld [vmem:[#allocation5 + $0x10] sm:$0xf]
    %v70 = vld [vmem:[#allocation5 + $0x14] sm:$0xf]
    %v71 = vld [vmem:[#allocation5 + $0x18] sm:$0xf]
    %v72 = vld [vmem:[#allocation5 + $0x1c] sm:$0xf]
    %v73 = vld [vmem:[#allocation5 + $0x20] sm:$0xf]
    %v74 = vld [vmem:[#allocation5 + $0x24] sm:$0xf]
    %v75 = vld [vmem:[#allocation5 + $0x28] sm:$0xf]
    %v76 = vld [vmem:[#allocation5 + $0x2c] sm:$0xf]
    %v77 = vld [vmem:[#allocation5 + $0x30] sm:$0xf]
    %v78 = vld [vmem:[#allocation5 + $0x34] sm:$0xf]
    %v79 = vld [vmem:[#allocation5 + $0x38] sm:$0xf]
    %v80 = vld [vmem:[#allocation5 + $0x3c] sm:$0xf]
    %v81 = vld [vmem:[#allocation7] sm:$0xf]
    %v82 = vld [vmem:[#allocation7 + $0x4] sm:$0xf]
    %v83 = vld [vmem:[#allocation7 + $0x8] sm:$0xf]
    %v84 = vld [vmem:[#allocation7 + $0xc] sm:$0xf]
    %v85 = vld [vmem:[#allocation7 + $0x10] sm:$0xf]
    %v86 = vld [vmem:[#allocation7 + $0x14] sm:$0xf]
    %v87 = vld [vmem:[#allocation7 + $0x18] sm:$0xf]
    %v88 = vld [vmem:[#allocation7 + $0x1c] sm:$0xf]
    %v89 = vld [vmem:[#allocation7 + $0x20] sm:$0xf]
    %v90 = vld [vmem:[#allocation7 + $0x24] sm:$0xf]
    %v91 = vld [vmem:[#allocation7 + $0x28] sm:$0xf]
    %v92 = vld [vmem:[#allocation7 + $0x2c] sm:$0xf]
    %v93 = vld [vmem:[#allocation7 + $0x30] sm:$0xf]
    %v94 = vld [vmem:[#allocation7 + $0x34] sm:$0xf]
    %v95 = vld [vmem:[#allocation7 + $0x38] sm:$0xf]
    %v96 = vld [vmem:[#allocation7 + $0x3c] sm:$0xf]
    %v113 = vunpack.c.l.b16 %v65
    %v114 = vunpack.c.l.b16 %v66
    %v115 = vunpack.c.l.b16 %v67
    %v116 = vunpack.c.l.b16 %v68
    %v117 = vunpack.c.l.b16 %v69
    %v118 = vunpack.c.l.b16 %v70
    %v119 = vunpack.c.l.b16 %v71
    %v120 = vunpack.c.l.b16 %v72
    %v121 = vunpack.c.l.b16 %v73
    %v122 = vunpack.c.l.b16 %v74
    %v123 = vunpack.c.l.b16 %v75
    %v124 = vunpack.c.l.b16 %v76
    %v125 = vunpack.c.l.b16 %v77
    %v126 = vunpack.c.l.b16 %v78
    %v127 = vunpack.c.l.b16 %v79
    %v128 = vunpack.c.l.b16 %v80
    %v129 = vpack.c.b16 %v114, %v113
    %v130 = vpack.c.b16 %v116, %v115
    %v131 = vpack.c.b16 %v118, %v117
    %v132 = vpack.c.b16 %v120, %v119
    %v133 = vpack.c.b16 %v122, %v121
    %v134 = vpack.c.b16 %v124, %v123
    %v135 = vpack.c.b16 %v126, %v125
    %v136 = vpack.c.b16 %v128, %v127
    %v161 = vunpack.c.l.b16 %v81
    %v162 = vunpack.c.l.b16 %v82
    %v163 = vunpack.c.l.b16 %v83
    %v164 = vunpack.c.l.b16 %v84
    %v165 = vunpack.c.l.b16 %v85
    %v166 = vunpack.c.l.b16 %v86
    %v167 = vunpack.c.l.b16 %v87
    %v168 = vunpack.c.l.b16 %v88
    %v169 = vunpack.c.l.b16 %v89
    %v170 = vunpack.c.l.b16 %v90
    %v171 = vunpack.c.l.b16 %v91
    %v172 = vunpack.c.l.b16 %v92
    %v173 = vunpack.c.l.b16 %v93
    %v174 = vunpack.c.l.b16 %v94
    %v175 = vunpack.c.l.b16 %v95
    %v176 = vunpack.c.l.b16 %v96
    %v177 = vpack.c.b16 %v162, %v161
    %v178 = vpack.c.b16 %v164, %v163
    %v179 = vpack.c.b16 %v166, %v165
    %v180 = vpack.c.b16 %v168, %v167
    %v181 = vpack.c.b16 %v170, %v169
    %v182 = vpack.c.b16 %v172, %v171
    %v183 = vpack.c.b16 %v174, %v173
    %v184 = vpack.c.b16 %v176, %v175
    %193 = vmatpush.bf16.msra.mxu0 %v184
    %194 = vmatpush.bf16.msra.mxu0 %v183
    %195 = vmatpush.bf16.msra.mxu0 %v182
    %196 = vmatpush.bf16.msra.mxu0 %v181
    %197 = vmatpush.bf16.msra.mxu0 %v180
    %198 = vmatpush.bf16.msra.mxu0 %v179
    %199 = vmatpush.bf16.msra.mxu0 %v178
    %200 = vmatpush.bf16.msra.mxu0 %v177
    %201 = vmatmul.bf16.gmra.mxu0 %v129
    %v202 = vpop.f32.mrf.mxu0
    %v203 = vadd.f32 0.0, %v202
    %v204 = vpop.f32.mrf.mxu0
    %v205 = vadd.f32 0.0, %v204
    %206 = vmatmul.bf16.gmra.mxu0 %v130
    %v207 = vpop.f32.mrf.mxu0
    %v208 = vadd.f32 0.0, %v207
    %v209 = vpop.f32.mrf.mxu0
    %v210 = vadd.f32 0.0, %v209
    %211 = vmatmul.bf16.gmra.mxu0 %v131
    %v212 = vpop.f32.mrf.mxu0
    %v213 = vadd.f32 0.0, %v212
    %v214 = vpop.f32.mrf.mxu0
    %v215 = vadd.f32 0.0, %v214
    %216 = vmatmul.bf16.gmra.mxu0 %v132
    %v217 = vpop.f32.mrf.mxu0
    %v218 = vadd.f32 0.0, %v217
    %v219 = vpop.f32.mrf.mxu0
    %v220 = vadd.f32 0.0, %v219
    %221 = vmatmul.bf16.gmra.mxu0 %v133
    %v222 = vpop.f32.mrf.mxu0
    %v223 = vadd.f32 0.0, %v222
    %v224 = vpop.f32.mrf.mxu0
    %v225 = vadd.f32 0.0, %v224
    %226 = vmatmul.bf16.gmra.mxu0 %v134
    %v227 = vpop.f32.mrf.mxu0
    %v228 = vadd.f32 0.0, %v227
    %v229 = vpop.f32.mrf.mxu0
    %v230 = vadd.f32 0.0, %v229
    %231 = vmatmul.bf16.gmra.mxu0 %v135
    %v232 = vpop.f32.mrf.mxu0
    %v233 = vadd.f32 0.0, %v232
    %v234 = vpop.f32.mrf.mxu0
    %v235 = vadd.f32 0.0, %v234
    %236 = vmatmul.bf16.gmra.mxu0 %v136
    %v237 = vpop.f32.mrf.mxu0
    %v238 = vadd.f32 0.0, %v237
    %v239 = vpop.f32.mrf.mxu0
    %v240 = vadd.f32 0.0, %v239
    %241 = vdwg.mxu0
    %v242 = vld [vmem:[#allocation2] sm:$0xf]
    %v243 = vld [vmem:[#allocation2 + $0x4] sm:$0xf]
    %v244 = vld [vmem:[#allocation2 + $0x8] sm:$0xf]
    %v245 = vld [vmem:[#allocation2 + $0xc] sm:$0xf]
    %v246 = vld [vmem:[#allocation2 + $0x10] sm:$0xf]
    %v247 = vld [vmem:[#allocation2 + $0x14] sm:$0xf]
    %v248 = vld [vmem:[#allocation2 + $0x18] sm:$0xf]
    %v249 = vld [vmem:[#allocation2 + $0x1c] sm:$0xf]
    %v250 = vld [vmem:[#allocation2 + $0x20] sm:$0xf]
    %v251 = vld [vmem:[#allocation2 + $0x24] sm:$0xf]
    %v252 = vld [vmem:[#allocation2 + $0x28] sm:$0xf]
    %v253 = vld [vmem:[#allocation2 + $0x2c] sm:$0xf]
    %v254 = vld [vmem:[#allocation2 + $0x30] sm:$0xf]
    %v255 = vld [vmem:[#allocation2 + $0x34] sm:$0xf]
    %v256 = vld [vmem:[#allocation2 + $0x38] sm:$0xf]
    %v257 = vld [vmem:[#allocation2 + $0x3c] sm:$0xf]
    %v258 = vpack.c.bf16 %v205, %v203
    %v259 = vpack.c.bf16 %v210, %v208
    %v260 = vpack.c.bf16 %v215, %v213
    %v261 = vpack.c.bf16 %v220, %v218
    %v262 = vpack.c.bf16 %v225, %v223
    %v263 = vpack.c.bf16 %v230, %v228
    %v264 = vpack.c.bf16 %v235, %v233
    %v265 = vpack.c.bf16 %v240, %v238
    %s266 = scalar_lea.vmem [#allocation7], 64
    %v267 = vld [vmem:[%s266] sm:$0xf]
    %v268 = vld [vmem:[%s266 + $0x4] sm:$0xf]
    %v269 = vld [vmem:[%s266 + $0x8] sm:$0xf]
    %v270 = vld [vmem:[%s266 + $0xc] sm:$0xf]
    %v271 = vld [vmem:[%s266 + $0x10] sm:$0xf]
    %v272 = vld [vmem:[%s266 + $0x14] sm:$0xf]
    %v273 = vld [vmem:[%s266 + $0x18] sm:$0xf]
    %v274 = vld [vmem:[%s266 + $0x1c] sm:$0xf]
    %v275 = vld [vmem:[%s266 + $0x20] sm:$0xf]
    %v276 = vld [vmem:[%s266 + $0x24] sm:$0xf]
    %v277 = vld [vmem:[%s266 + $0x28] sm:$0xf]
    %v278 = vld [vmem:[%s266 + $0x2c] sm:$0xf]
    %v279 = vld [vmem:[%s266 + $0x30] sm:$0xf]
    %v280 = vld [vmem:[%s266 + $0x34] sm:$0xf]
    %v281 = vld [vmem:[%s266 + $0x38] sm:$0xf]
    %v282 = vld [vmem:[%s266 + $0x3c] sm:$0xf]
    %v299 = vunpack.c.l.b16 %v267
    %v300 = vunpack.c.l.b16 %v268
    %v301 = vunpack.c.l.b16 %v269
    %v302 = vunpack.c.l.b16 %v270
    %v303 = vunpack.c.l.b16 %v271
    %v304 = vunpack.c.l.b16 %v272
    %v305 = vunpack.c.l.b16 %v273
    %v306 = vunpack.c.l.b16 %v274
    %v307 = vunpack.c.l.b16 %v275
    %v308 = vunpack.c.l.b16 %v276
    %v309 = vunpack.c.l.b16 %v277
    %v310 = vunpack.c.l.b16 %v278
    %v311 = vunpack.c.l.b16 %v279
    %v312 = vunpack.c.l.b16 %v280
    %v313 = vunpack.c.l.b16 %v281
    %v314 = vunpack.c.l.b16 %v282
    %v315 = vpack.c.b16 %v300, %v299
    %v316 = vpack.c.b16 %v302, %v301
    %v317 = vpack.c.b16 %v304, %v303
    %v318 = vpack.c.b16 %v306, %v305
    %v319 = vpack.c.b16 %v308, %v307
    %v320 = vpack.c.b16 %v310, %v309
    %v321 = vpack.c.b16 %v312, %v311
    %v322 = vpack.c.b16 %v314, %v313
    %331 = vmatpush.bf16.msra.mxu0 %v322
    %332 = vmatpush.bf16.msra.mxu0 %v321
    %333 = vmatpush.bf16.msra.mxu0 %v320
    %334 = vmatpush.bf16.msra.mxu0 %v319
    %335 = vmatpush.bf16.msra.mxu0 %v318
    %336 = vmatpush.bf16.msra.mxu0 %v317
    %337 = vmatpush.bf16.msra.mxu0 %v316
    %338 = vmatpush.bf16.msra.mxu0 %v315
    %339 = vmatmul.bf16.gmra.mxu0 %v129
    %v340 = vpop.f32.mrf.mxu0
    %v341 = vadd.f32 0.0, %v340
    %v342 = vpop.f32.mrf.mxu0
    %v343 = vadd.f32 0.0, %v342
    %344 = vmatmul.bf16.gmra.mxu0 %v130
    %v345 = vpop.f32.mrf.mxu0
    %v346 = vadd.f32 0.0, %v345
    %v347 = vpop.f32.mrf.mxu0
    %v348 = vadd.f32 0.0, %v347
    %349 = vmatmul.bf16.gmra.mxu0 %v131
    %v350 = vpop.f32.mrf.mxu0
    %v351 = vadd.f32 0.0, %v350
    %v352 = vpop.f32.mrf.mxu0
    %v353 = vadd.f32 0.0, %v352
    %354 = vmatmul.bf16.gmra.mxu0 %v132
    %v355 = vpop.f32.mrf.mxu0
    %v356 = vadd.f32 0.0, %v355
    %v357 = vpop.f32.mrf.mxu0
    %v358 = vadd.f32 0.0, %v357
    %359 = vmatmul.bf16.gmra.mxu0 %v133
    %v360 = vpop.f32.mrf.mxu0
    %v361 = vadd.f32 0.0, %v360
    %v362 = vpop.f32.mrf.mxu0
    %v363 = vadd.f32 0.0, %v362
    %364 = vmatmul.bf16.gmra.mxu0 %v134
    %v365 = vpop.f32.mrf.mxu0
    %v366 = vadd.f32 0.0, %v365
    %v367 = vpop.f32.mrf.mxu0
    %v368 = vadd.f32 0.0, %v367
    %369 = vmatmul.bf16.gmra.mxu0 %v135
    %v370 = vpop.f32.mrf.mxu0
    %v371 = vadd.f32 0.0, %v370
    %v372 = vpop.f32.mrf.mxu0
    %v373 = vadd.f32 0.0, %v372
    %374 = vmatmul.bf16.gmra.mxu0 %v136
    %v375 = vpop.f32.mrf.mxu0
    %v376 = vadd.f32 0.0, %v375
    %v377 = vpop.f32.mrf.mxu0
    %v378 = vadd.f32 0.0, %v377
    %379 = vdwg.mxu0
    %s380 = scalar_lea.vmem [#allocation2], 64
    %v381 = vld [vmem:[%s380] sm:$0xf]
    %v382 = vld [vmem:[%s380 + $0x4] sm:$0xf]
    %v383 = vld [vmem:[%s380 + $0x8] sm:$0xf]
    %v384 = vld [vmem:[%s380 + $0xc] sm:$0xf]
    %v385 = vld [vmem:[%s380 + $0x10] sm:$0xf]
    %v386 = vld [vmem:[%s380 + $0x14] sm:$0xf]
    %v387 = vld [vmem:[%s380 + $0x18] sm:$0xf]
    %v388 = vld [vmem:[%s380 + $0x1c] sm:$0xf]
    %v389 = vld [vmem:[%s380 + $0x20] sm:$0xf]
    %v390 = vld [vmem:[%s380 + $0x24] sm:$0xf]
    %v391 = vld [vmem:[%s380 + $0x28] sm:$0xf]
    %v392 = vld [vmem:[%s380 + $0x2c] sm:$0xf]
    %v393 = vld [vmem:[%s380 + $0x30] sm:$0xf]
    %v394 = vld [vmem:[%s380 + $0x34] sm:$0xf]
    %v395 = vld [vmem:[%s380 + $0x38] sm:$0xf]
    %v396 = vld [vmem:[%s380 + $0x3c] sm:$0xf]
    %v397 = vpack.c.bf16 %v343, %v341
    %v398 = vpack.c.bf16 %v348, %v346
    %v399 = vpack.c.bf16 %v353, %v351
    %v400 = vpack.c.bf16 %v358, %v356
    %v401 = vpack.c.bf16 %v363, %v361
    %v402 = vpack.c.bf16 %v368, %v366
    %v403 = vpack.c.bf16 %v373, %v371
    %v404 = vpack.c.bf16 %v378, %v376
    %v421 = vunpack.c.l.b16 %v381
    %v422 = vunpack.c.l.b16 %v382
    %v423 = vunpack.c.l.b16 %v383
    %v424 = vunpack.c.l.b16 %v384
    %v425 = vunpack.c.l.b16 %v385
    %v426 = vunpack.c.l.b16 %v386
    %v427 = vunpack.c.l.b16 %v387
    %v428 = vunpack.c.l.b16 %v388
    %v429 = vunpack.c.l.b16 %v389
    %v430 = vunpack.c.l.b16 %v390
    %v431 = vunpack.c.l.b16 %v391
    %v432 = vunpack.c.l.b16 %v392
    %v433 = vunpack.c.l.b16 %v393
    %v434 = vunpack.c.l.b16 %v394
    %v435 = vunpack.c.l.b16 %v395
    %v436 = vunpack.c.l.b16 %v396
    %v437 = vpack.c.b16 %v422, %v421
    %v438 = vpack.c.b16 %v424, %v423
    %v439 = vpack.c.b16 %v426, %v425
    %v440 = vpack.c.b16 %v428, %v427
    %v441 = vpack.c.b16 %v430, %v429
    %v442 = vpack.c.b16 %v432, %v431
    %v443 = vpack.c.b16 %v434, %v433
    %v444 = vpack.c.b16 %v436, %v435
    %453 = vmatpush.bf16.msra.mxu0 %v404
    %454 = vmatpush.bf16.msra.mxu0 %v403
    %455 = vmatpush.bf16.msra.mxu0 %v402
    %456 = vmatpush.bf16.msra.mxu0 %v401
    %457 = vmatpush.bf16.msra.mxu0 %v400
    %458 = vmatpush.bf16.msra.mxu0 %v399
    %459 = vmatpush.bf16.msra.mxu0 %v398
    %460 = vmatpush.bf16.msra.mxu0 %v397
    %461 = vmatmul.bf16.gmra.mxu0 %v437
    %v462 = vpop.f32.mrf.mxu0
    %v463 = vadd.f32 0.0, %v462
    %v464 = vpop.f32.mrf.mxu0
    %v465 = vadd.f32 0.0, %v464
    %466 = vmatmul.bf16.gmra.mxu0 %v438
    %v467 = vpop.f32.mrf.mxu0
    %v468 = vadd.f32 0.0, %v467
    %v469 = vpop.f32.mrf.mxu0
    %v470 = vadd.f32 0.0, %v469
    %471 = vmatmul.bf16.gmra.mxu0 %v439
    %v472 = vpop.f32.mrf.mxu0
    %v473 = vadd.f32 0.0, %v472
    %v474 = vpop.f32.mrf.mxu0
    %v475 = vadd.f32 0.0, %v474
    %476 = vmatmul.bf16.gmra.mxu0 %v440
    %v477 = vpop.f32.mrf.mxu0
    %v478 = vadd.f32 0.0, %v477
    %v479 = vpop.f32.mrf.mxu0
    %v480 = vadd.f32 0.0, %v479
    %481 = vmatmul.bf16.gmra.mxu0 %v441
    %v482 = vpop.f32.mrf.mxu0
    %v483 = vadd.f32 0.0, %v482
    %v484 = vpop.f32.mrf.mxu0
    %v485 = vadd.f32 0.0, %v484
    %486 = vmatmul.bf16.gmra.mxu0 %v442
    %v487 = vpop.f32.mrf.mxu0
    %v488 = vadd.f32 0.0, %v487
    %v489 = vpop.f32.mrf.mxu0
    %v490 = vadd.f32 0.0, %v489
    %491 = vmatmul.bf16.gmra.mxu0 %v443
    %v492 = vpop.f32.mrf.mxu0
    %v493 = vadd.f32 0.0, %v492
    %v494 = vpop.f32.mrf.mxu0
    %v495 = vadd.f32 0.0, %v494
    %496 = vmatmul.bf16.gmra.mxu0 %v444
    %v497 = vpop.f32.mrf.mxu0
    %v498 = vadd.f32 0.0, %v497
    %v499 = vpop.f32.mrf.mxu0
    %v500 = vadd.f32 0.0, %v499
    %501 = vdwg.mxu0
    %v518 = vunpack.c.l.b16 %v242
    %v519 = vunpack.c.l.b16 %v243
    %v520 = vunpack.c.l.b16 %v244
    %v521 = vunpack.c.l.b16 %v245
    %v522 = vunpack.c.l.b16 %v246
    %v523 = vunpack.c.l.b16 %v247
    %v524 = vunpack.c.l.b16 %v248
    %v525 = vunpack.c.l.b16 %v249
    %v526 = vunpack.c.l.b16 %v250
    %v527 = vunpack.c.l.b16 %v251
    %v528 = vunpack.c.l.b16 %v252
    %v529 = vunpack.c.l.b16 %v253
    %v530 = vunpack.c.l.b16 %v254
    %v531 = vunpack.c.l.b16 %v255
    %v532 = vunpack.c.l.b16 %v256
    %v533 = vunpack.c.l.b16 %v257
    %v534 = vpack.c.b16 %v519, %v518
    %v535 = vpack.c.b16 %v521, %v520
    %v536 = vpack.c.b16 %v523, %v522
    %v537 = vpack.c.b16 %v525, %v524
    %v538 = vpack.c.b16 %v527, %v526
    %v539 = vpack.c.b16 %v529, %v528
    %v540 = vpack.c.b16 %v531, %v530
    %v541 = vpack.c.b16 %v533, %v532
    %550 = vmatpush.bf16.msra.mxu0 %v265
    %551 = vmatpush.bf16.msra.mxu0 %v264
    %552 = vmatpush.bf16.msra.mxu0 %v263
    %553 = vmatpush.bf16.msra.mxu0 %v262
    %554 = vmatpush.bf16.msra.mxu0 %v261
    %555 = vmatpush.bf16.msra.mxu0 %v260
    %556 = vmatpush.bf16.msra.mxu0 %v259
    %557 = vmatpush.bf16.msra.mxu0 %v258
    %558 = vmatmul.bf16.gmra.mxu0 %v534
    %v559 = vpop.f32.mrf.mxu0
    %v560 = vadd.f32 %v463, %v559
    %v561 = vpop.f32.mrf.mxu0
    %v562 = vadd.f32 %v465, %v561
    %563 = vmatmul.bf16.gmra.mxu0 %v535
    %v564 = vpop.f32.mrf.mxu0
    %v565 = vadd.f32 %v468, %v564
    %v566 = vpop.f32.mrf.mxu0
    %v567 = vadd.f32 %v470, %v566
    %568 = vmatmul.bf16.gmra.mxu0 %v536
    %v569 = vpop.f32.mrf.mxu0
    %v570 = vadd.f32 %v473, %v569
    %v571 = vpop.f32.mrf.mxu0
    %v572 = vadd.f32 %v475, %v571
    %573 = vmatmul.bf16.gmra.mxu0 %v537
    %v574 = vpop.f32.mrf.mxu0
    %v575 = vadd.f32 %v478, %v574
    %v576 = vpop.f32.mrf.mxu0
    %v577 = vadd.f32 %v480, %v576
    %578 = vmatmul.bf16.gmra.mxu0 %v538
    %v579 = vpop.f32.mrf.mxu0
    %v580 = vadd.f32 %v483, %v579
    %v581 = vpop.f32.mrf.mxu0
    %v582 = vadd.f32 %v485, %v581
    %583 = vmatmul.bf16.gmra.mxu0 %v539
    %v584 = vpop.f32.mrf.mxu0
    %v585 = vadd.f32 %v488, %v584
    %v586 = vpop.f32.mrf.mxu0
    %v587 = vadd.f32 %v490, %v586
    %588 = vmatmul.bf16.gmra.mxu0 %v540
    %v589 = vpop.f32.mrf.mxu0
    %v590 = vadd.f32 %v493, %v589
    %v591 = vpop.f32.mrf.mxu0
    %v592 = vadd.f32 %v495, %v591
    %593 = vmatmul.bf16.gmra.mxu0 %v541
    %v594 = vpop.f32.mrf.mxu0
    %v595 = vadd.f32 %v498, %v594
    %v596 = vpop.f32.mrf.mxu0
    %v597 = vadd.f32 %v500, %v596
    %598 = vdwg.mxu0
    %s599 = scalar_lea.vmem [#allocation7], 128
    %v600 = vld [vmem:[%s599] sm:$0xf]
    %v601 = vld [vmem:[%s599 + $0x4] sm:$0xf]
    %v602 = vld [vmem:[%s599 + $0x8] sm:$0xf]
    %v603 = vld [vmem:[%s599 + $0xc] sm:$0xf]
    %v604 = vld [vmem:[%s599 + $0x10] sm:$0xf]
    %v605 = vld [vmem:[%s599 + $0x14] sm:$0xf]
    %v606 = vld [vmem:[%s599 + $0x18] sm:$0xf]
    %v607 = vld [vmem:[%s599 + $0x1c] sm:$0xf]
    %v608 = vld [vmem:[%s599 + $0x20] sm:$0xf]
    %v609 = vld [vmem:[%s599 + $0x24] sm:$0xf]
    %v610 = vld [vmem:[%s599 + $0x28] sm:$0xf]
    %v611 = vld [vmem:[%s599 + $0x2c] sm:$0xf]
    %v612 = vld [vmem:[%s599 + $0x30] sm:$0xf]
    %v613 = vld [vmem:[%s599 + $0x34] sm:$0xf]
    %v614 = vld [vmem:[%s599 + $0x38] sm:$0xf]
    %v615 = vld [vmem:[%s599 + $0x3c] sm:$0xf]
    %v632 = vunpack.c.l.b16 %v600
    %v633 = vunpack.c.l.b16 %v601
    %v634 = vunpack.c.l.b16 %v602
    %v635 = vunpack.c.l.b16 %v603
    %v636 = vunpack.c.l.b16 %v604
    %v637 = vunpack.c.l.b16 %v605
    %v638 = vunpack.c.l.b16 %v606
    %v639 = vunpack.c.l.b16 %v607
    %v640 = vunpack.c.l.b16 %v608
    %v641 = vunpack.c.l.b16 %v609
    %v642 = vunpack.c.l.b16 %v610
    %v643 = vunpack.c.l.b16 %v611
    %v644 = vunpack.c.l.b16 %v612
    %v645 = vunpack.c.l.b16 %v613
    %v646 = vunpack.c.l.b16 %v614
    %v647 = vunpack.c.l.b16 %v615
    %v648 = vpack.c.b16 %v633, %v632
    %v649 = vpack.c.b16 %v635, %v634
    %v650 = vpack.c.b16 %v637, %v636
    %v651 = vpack.c.b16 %v639, %v638
    %v652 = vpack.c.b16 %v641, %v640
    %v653 = vpack.c.b16 %v643, %v642
    %v654 = vpack.c.b16 %v645, %v644
    %v655 = vpack.c.b16 %v647, %v646
    %664 = vmatpush.bf16.msra.mxu0 %v655
    %665 = vmatpush.bf16.msra.mxu0 %v654
    %666 = vmatpush.bf16.msra.mxu0 %v653
    %667 = vmatpush.bf16.msra.mxu0 %v652
    %668 = vmatpush.bf16.msra.mxu0 %v651
    %669 = vmatpush.bf16.msra.mxu0 %v650
    %670 = vmatpush.bf16.msra.mxu0 %v649
    %671 = vmatpush.bf16.msra.mxu0 %v648
    %672 = vmatmul.bf16.gmra.mxu0 %v129
    %v673 = vpop.f32.mrf.mxu0
    %v674 = vadd.f32 0.0, %v673
    %v675 = vpop.f32.mrf.mxu0
    %v676 = vadd.f32 0.0, %v675
    %677 = vmatmul.bf16.gmra.mxu0 %v130
    %v678 = vpop.f32.mrf.mxu0
    %v679 = vadd.f32 0.0, %v678
    %v680 = vpop.f32.mrf.mxu0
    %v681 = vadd.f32 0.0, %v680
    %682 = vmatmul.bf16.gmra.mxu0 %v131
    %v683 = vpop.f32.mrf.mxu0
    %v684 = vadd.f32 0.0, %v683
    %v685 = vpop.f32.mrf.mxu0
    %v686 = vadd.f32 0.0, %v685
    %687 = vmatmul.bf16.gmra.mxu0 %v132
    %v688 = vpop.f32.mrf.mxu0
    %v689 = vadd.f32 0.0, %v688
    %v690 = vpop.f32.mrf.mxu0
    %v691 = vadd.f32 0.0, %v690
    %692 = vmatmul.bf16.gmra.mxu0 %v133
    %v693 = vpop.f32.mrf.mxu0
    %v694 = vadd.f32 0.0, %v693
    %v695 = vpop.f32.mrf.mxu0
    %v696 = vadd.f32 0.0, %v695
    %697 = vmatmul.bf16.gmra.mxu0 %v134
    %v698 = vpop.f32.mrf.mxu0
    %v699 = vadd.f32 0.0, %v698
    %v700 = vpop.f32.mrf.mxu0
    %v701 = vadd.f32 0.0, %v700
    %702 = vmatmul.bf16.gmra.mxu0 %v135
    %v703 = vpop.f32.mrf.mxu0
    %v704 = vadd.f32 0.0, %v703
    %v705 = vpop.f32.mrf.mxu0
    %v706 = vadd.f32 0.0, %v705
    %707 = vmatmul.bf16.gmra.mxu0 %v136
    %v708 = vpop.f32.mrf.mxu0
    %v709 = vadd.f32 0.0, %v708
    %v710 = vpop.f32.mrf.mxu0
    %v711 = vadd.f32 0.0, %v710
    %712 = vdwg.mxu0
    %s713 = scalar_lea.vmem [#allocation2], 128
    %v714 = vld [vmem:[%s713] sm:$0xf]
    %v715 = vld [vmem:[%s713 + $0x4] sm:$0xf]
    %v716 = vld [vmem:[%s713 + $0x8] sm:$0xf]
    %v717 = vld [vmem:[%s713 + $0xc] sm:$0xf]
    %v718 = vld [vmem:[%s713 + $0x10] sm:$0xf]
    %v719 = vld [vmem:[%s713 + $0x14] sm:$0xf]
    %v720 = vld [vmem:[%s713 + $0x18] sm:$0xf]
    %v721 = vld [vmem:[%s713 + $0x1c] sm:$0xf]
    %v722 = vld [vmem:[%s713 + $0x20] sm:$0xf]
    %v723 = vld [vmem:[%s713 + $0x24] sm:$0xf]
    %v724 = vld [vmem:[%s713 + $0x28] sm:$0xf]
    %v725 = vld [vmem:[%s713 + $0x2c] sm:$0xf]
    %v726 = vld [vmem:[%s713 + $0x30] sm:$0xf]
    %v727 = vld [vmem:[%s713 + $0x34] sm:$0xf]
    %v728 = vld [vmem:[%s713 + $0x38] sm:$0xf]
    %v729 = vld [vmem:[%s713 + $0x3c] sm:$0xf]
    %v730 = vpack.c.bf16 %v676, %v674
    %v731 = vpack.c.bf16 %v681, %v679
    %v732 = vpack.c.bf16 %v686, %v684
    %v733 = vpack.c.bf16 %v691, %v689
    %v734 = vpack.c.bf16 %v696, %v694
    %v735 = vpack.c.bf16 %v701, %v699
    %v736 = vpack.c.bf16 %v706, %v704
    %v737 = vpack.c.bf16 %v711, %v709
    %v754 = vunpack.c.l.b16 %v714
    %v755 = vunpack.c.l.b16 %v715
    %v756 = vunpack.c.l.b16 %v716
    %v757 = vunpack.c.l.b16 %v717
    %v758 = vunpack.c.l.b16 %v718
    %v759 = vunpack.c.l.b16 %v719
    %v760 = vunpack.c.l.b16 %v720
    %v761 = vunpack.c.l.b16 %v721
    %v762 = vunpack.c.l.b16 %v722
    %v763 = vunpack.c.l.b16 %v723
    %v764 = vunpack.c.l.b16 %v724
    %v765 = vunpack.c.l.b16 %v725
    %v766 = vunpack.c.l.b16 %v726
    %v767 = vunpack.c.l.b16 %v727
    %v768 = vunpack.c.l.b16 %v728
    %v769 = vunpack.c.l.b16 %v729
    %v770 = vpack.c.b16 %v755, %v754
    %v771 = vpack.c.b16 %v757, %v756
    %v772 = vpack.c.b16 %v759, %v758
    %v773 = vpack.c.b16 %v761, %v760
    %v774 = vpack.c.b16 %v763, %v762
    %v775 = vpack.c.b16 %v765, %v764
    %v776 = vpack.c.b16 %v767, %v766
    %v777 = vpack.c.b16 %v769, %v768
    %786 = vmatpush.bf16.msra.mxu0 %v737
    %787 = vmatpush.bf16.msra.mxu0 %v736
    %788 = vmatpush.bf16.msra.mxu0 %v735
    %789 = vmatpush.bf16.msra.mxu0 %v734
    %790 = vmatpush.bf16.msra.mxu0 %v733
    %791 = vmatpush.bf16.msra.mxu0 %v732
    %792 = vmatpush.bf16.msra.mxu0 %v731
    %793 = vmatpush.bf16.msra.mxu0 %v730
    %794 = vmatmul.bf16.gmra.mxu0 %v770
    %v795 = vpop.f32.mrf.mxu0
    %v796 = vadd.f32 0.0, %v795
    %v797 = vpop.f32.mrf.mxu0
    %v798 = vadd.f32 0.0, %v797
    %799 = vmatmul.bf16.gmra.mxu0 %v771
    %v800 = vpop.f32.mrf.mxu0
    %v801 = vadd.f32 0.0, %v800
    %v802 = vpop.f32.mrf.mxu0
    %v803 = vadd.f32 0.0, %v802
    %804 = vmatmul.bf16.gmra.mxu0 %v772
    %v805 = vpop.f32.mrf.mxu0
    %v806 = vadd.f32 0.0, %v805
    %v807 = vpop.f32.mrf.mxu0
    %v808 = vadd.f32 0.0, %v807
    %809 = vmatmul.bf16.gmra.mxu0 %v773
    %v810 = vpop.f32.mrf.mxu0
    %v811 = vadd.f32 0.0, %v810
    %v812 = vpop.f32.mrf.mxu0
    %v813 = vadd.f32 0.0, %v812
    %814 = vmatmul.bf16.gmra.mxu0 %v774
    %v815 = vpop.f32.mrf.mxu0
    %v816 = vadd.f32 0.0, %v815
    %v817 = vpop.f32.mrf.mxu0
    %v818 = vadd.f32 0.0, %v817
    %819 = vmatmul.bf16.gmra.mxu0 %v775
    %v820 = vpop.f32.mrf.mxu0
    %v821 = vadd.f32 0.0, %v820
    %v822 = vpop.f32.mrf.mxu0
    %v823 = vadd.f32 0.0, %v822
    %824 = vmatmul.bf16.gmra.mxu0 %v776
    %v825 = vpop.f32.mrf.mxu0
    %v826 = vadd.f32 0.0, %v825
    %v827 = vpop.f32.mrf.mxu0
    %v828 = vadd.f32 0.0, %v827
    %829 = vmatmul.bf16.gmra.mxu0 %v777
    %v830 = vpop.f32.mrf.mxu0
    %v831 = vadd.f32 0.0, %v830
    %v832 = vpop.f32.mrf.mxu0
    %v833 = vadd.f32 0.0, %v832
    %834 = vdwg.mxu0
    %v835 = vadd.f32 %v560, %v796
    %v836 = vadd.f32 %v562, %v798
    %v837 = vadd.f32 %v565, %v801
    %v838 = vadd.f32 %v567, %v803
    %v839 = vadd.f32 %v570, %v806
    %v840 = vadd.f32 %v572, %v808
    %v841 = vadd.f32 %v575, %v811
    %v842 = vadd.f32 %v577, %v813
    %v843 = vadd.f32 %v580, %v816
    %v844 = vadd.f32 %v582, %v818
    %v845 = vadd.f32 %v585, %v821
    %v846 = vadd.f32 %v587, %v823
    %v847 = vadd.f32 %v590, %v826
    %v848 = vadd.f32 %v592, %v828
    %v849 = vadd.f32 %v595, %v831
    %v850 = vadd.f32 %v597, %v833
    %v851 = vld [vmem:[%s3] sm:$0x1]
    %v853 = vperm.slane %v851, 0
    %v855 = vadd.f32 %v835, %v853
    %v856 = vadd.f32 %v836, %v853
    %v857 = vadd.f32 %v837, %v853
    %v858 = vadd.f32 %v838, %v853
    %v859 = vadd.f32 %v839, %v853
    %v860 = vadd.f32 %v840, %v853
    %v861 = vadd.f32 %v841, %v853
    %v862 = vadd.f32 %v842, %v853
    %v863 = vadd.f32 %v843, %v853
    %v864 = vadd.f32 %v844, %v853
    %v865 = vadd.f32 %v845, %v853
    %v866 = vadd.f32 %v846, %v853
    %v867 = vadd.f32 %v847, %v853
    %v868 = vadd.f32 %v848, %v853
    %v869 = vadd.f32 %v849, %v853
    %v870 = vadd.f32 %v850, %v853
    %v871 = vmax.f32 %v855, 0.0
    %v872 = vmax.f32 %v856, 0.0
    %v873 = vmax.f32 %v857, 0.0
    %v874 = vmax.f32 %v858, 0.0
    %v875 = vmax.f32 %v859, 0.0
    %v876 = vmax.f32 %v860, 0.0
    %v877 = vmax.f32 %v861, 0.0
    %v878 = vmax.f32 %v862, 0.0
    %v879 = vmax.f32 %v863, 0.0
    %v880 = vmax.f32 %v864, 0.0
    %v881 = vmax.f32 %v865, 0.0
    %v882 = vmax.f32 %v866, 0.0
    %v883 = vmax.f32 %v867, 0.0
    %v884 = vmax.f32 %v868, 0.0
    %v885 = vmax.f32 %v869, 0.0
    %v886 = vmax.f32 %v870, 0.0
    %v887 = vlaneseq
    %v888 = vshrl.u32 %v887, 7
    %v889 = vadd.s32 %v888, 8
    %v890 = vadd.s32 %v888, 16
    %v891 = vadd.s32 %v888, 24
    %v892 = vadd.s32 %v888, 32
    %v893 = vadd.s32 %v888, 40
    %v894 = vadd.s32 %v888, 48
    %v895 = vadd.s32 %v888, 56
    %v896 = vadd.s32 %v888, 64
    %v897 = vadd.s32 %v888, 72
    %v898 = vadd.s32 %v888, 80
    %v899 = vadd.s32 %v888, 88
    %v900 = vadd.s32 %v888, 96
    %v901 = vadd.s32 %v888, 104
    %v902 = vadd.s32 %v888, 112
    %v903 = vadd.s32 %v888, 120
    %s904 = smul.u32 0, 128
    %v905 = vstv %s904
    %v906 = vadd.s32 %v888, %v905
    %v907 = vadd.s32 %v889, %v905
    %v908 = vadd.s32 %v890, %v905
    %v909 = vadd.s32 %v891, %v905
    %v910 = vadd.s32 %v892, %v905
    %v911 = vadd.s32 %v893, %v905
    %v912 = vadd.s32 %v894, %v905
    %v913 = vadd.s32 %v895, %v905
    %v914 = vadd.s32 %v896, %v905
    %v915 = vadd.s32 %v897, %v905
    %v916 = vadd.s32 %v898, %v905
    %v917 = vadd.s32 %v899, %v905
    %v918 = vadd.s32 %v900, %v905
    %v919 = vadd.s32 %v901, %v905
    %v920 = vadd.s32 %v902, %v905
    %v921 = vadd.s32 %v903, %v905
    %vm922 = vcmp.lt.s32.totalorder %v906, 32
    %vm923 = vcmp.lt.s32.totalorder %v907, 32
    %vm924 = vcmp.lt.s32.totalorder %v908, 32
    %vm925 = vcmp.lt.s32.totalorder %v909, 32
    %vm926 = vcmp.lt.s32.totalorder %v910, 32
    %vm927 = vcmp.lt.s32.totalorder %v911, 32
    %vm928 = vcmp.lt.s32.totalorder %v912, 32
    %vm929 = vcmp.lt.s32.totalorder %v913, 32
    %vm930 = vcmp.lt.s32.totalorder %v914, 32
    %vm931 = vcmp.lt.s32.totalorder %v915, 32
    %vm932 = vcmp.lt.s32.totalorder %v916, 32
    %vm933 = vcmp.lt.s32.totalorder %v917, 32
    %vm934 = vcmp.lt.s32.totalorder %v918, 32
    %vm935 = vcmp.lt.s32.totalorder %v919, 32
    %vm936 = vcmp.lt.s32.totalorder %v920, 32
    %vm937 = vcmp.lt.s32.totalorder %v921, 32
    %v938 = vsel %vm922, %v871, 0.0
    %v939 = vsel %vm923, %v872, 0.0
    %v940 = vsel %vm924, %v873, 0.0
    %v941 = vsel %vm925, %v874, 0.0
    %v942 = vsel %vm926, %v875, 0.0
    %v943 = vsel %vm927, %v876, 0.0
    %v944 = vsel %vm928, %v877, 0.0
    %v945 = vsel %vm929, %v878, 0.0
    %v946 = vsel %vm930, %v879, 0.0
    %v947 = vsel %vm931, %v880, 0.0
    %v948 = vsel %vm932, %v881, 0.0
    %v949 = vsel %vm933, %v882, 0.0
    %v950 = vsel %vm934, %v883, 0.0
    %v951 = vsel %vm935, %v884, 0.0
    %v952 = vsel %vm936, %v885, 0.0
    %v953 = vsel %vm937, %v886, 0.0
    %v954 = vpack.c.bf16 %v938, %v938
    %v955 = vpack.c.bf16 %v939, %v939
    %v956 = vpack.c.bf16 %v940, %v940
    %v957 = vpack.c.bf16 %v941, %v941
    %v958 = vpack.c.bf16 %v942, %v942
    %v959 = vpack.c.bf16 %v943, %v943
    %v960 = vpack.c.bf16 %v944, %v944
    %v961 = vpack.c.bf16 %v945, %v945
    %v962 = vpack.c.bf16 %v946, %v946
    %v963 = vpack.c.bf16 %v947, %v947
    %v964 = vpack.c.bf16 %v948, %v948
    %v965 = vpack.c.bf16 %v949, %v949
    %v966 = vpack.c.bf16 %v950, %v950
    %v967 = vpack.c.bf16 %v951, %v951
    %v968 = vpack.c.bf16 %v952, %v952
    %v969 = vpack.c.bf16 %v953, %v953
    %970 = vst [vmem:[#allocation8] sm:$0xf] %v954
    %971 = vst [vmem:[#allocation8 + $0x4] sm:$0xf] %v955
    %972 = vst [vmem:[#allocation8 + $0x8] sm:$0xf] %v956
    %973 = vst [vmem:[#allocation8 + $0xc] sm:$0xf] %v957
    %974 = vst [vmem:[#allocation8 + $0x10] sm:$0xf] %v958
    %975 = vst [vmem:[#allocation8 + $0x14] sm:$0xf] %v959
    %976 = vst [vmem:[#allocation8 + $0x18] sm:$0xf] %v960
    %977 = vst [vmem:[#allocation8 + $0x1c] sm:$0xf] %v961
    %978 = vst [vmem:[#allocation8 + $0x20] sm:$0xf] %v962
    %979 = vst [vmem:[#allocation8 + $0x24] sm:$0xf] %v963
    %980 = vst [vmem:[#allocation8 + $0x28] sm:$0xf] %v964
    %981 = vst [vmem:[#allocation8 + $0x2c] sm:$0xf] %v965
    %982 = vst [vmem:[#allocation8 + $0x30] sm:$0xf] %v966
    %983 = vst [vmem:[#allocation8 + $0x34] sm:$0xf] %v967
    %984 = vst [vmem:[#allocation8 + $0x38] sm:$0xf] %v968
    %985 = vst [vmem:[#allocation8 + $0x3c] sm:$0xf] %v969
    // Predicated region
    $region30: #{tpu_custom_call.1} parent=1 // pred_check
      _
    $region31: #{tpu_custom_call.1} parent=1 // pred_check_branch
      %987 = sbr.rel (0) target = $region33
    $region32: #{tpu_custom_call.1} parent=1 // pred_region
      %989 = vsyncadd [#allocation4], 0
      %s990 = sshll.u32 [#allocation8], 4
      %s991 = int_to_ptr.vmem [resolvable:$true] %s990
      %s992 = sshll.u32 %s4, 4
      %s993 = int_to_ptr.hbm [resolvable:$true] %s992
      %998 = dma.vmem_to_hbm [thread:$0]  %s991, 1024, %s993, [#allocation4], 64, 64, 4
    $region33: #{tpu_custom_call.1} parent=1 // pred_fallthru
      _
    // Predicated region
    $region34: #{tpu_custom_call.1} parent=1 // pred_check
      _
    $region35: #{tpu_custom_call.1} parent=1 // pred_check_branch
      %1000 = sbr.rel (0) target = $region37
    $region36: #{tpu_custom_call.1} parent=1 // pred_region
      %1002 = dma.done [#allocation4], 1024
    $region37: #{tpu_custom_call.1} parent=1 // pred_fallthru
      _
    %1003 = vsyncpa [#allocation3], 1
    %1004 = vsyncpa [#allocation6], 1
    %1005 = vsyncpa [#allocation4], 1

</llo_original>
